<compile_context>
chip_gen: v7x
topology: tpu7x:2x2x1
jax: 0.10.0
libtpu: 0.0.40
codegen_flags: <defaults>
</compile_context>

<pallas_src>
import jax
import jax.numpy as jnp
from jax.experimental import pallas as pl
from jax.experimental.pallas import tpu as pltpu

BN_EPS = 1e-5
LANE = 128


def _round_up(n, m):
    return ((n + m - 1) // m) * m


# ----------------------------------------------------------------------------
# Kernel: x @ W1 + b1 -> sigmoid -> @ W2' + b2' -> sigmoid -> @ W3' + b3'
# (W2'/b2' absorb BN1, W3'/b3' absorb BN2; hidden dims padded to 128 lanes,
#  input/output feature dims left at their natural widths.)
# ----------------------------------------------------------------------------
def _sigmoid_f32(h):
    # 1 / (1 + exp(-h)); approx reciprocal runs on the EUP slot (nearly free).
    return pl.reciprocal(1.0 + jnp.exp(-h), approx=True)


def encoder_kernel(x_ref, w1_ref, b1_ref, w2_ref, b2_ref, w3_ref, b3_ref, out_ref):
    mm_dtype = w1_ref.dtype  # bf16 matmul operands, f32 accumulation/elementwise

    # Block 0: Linear(input_len -> h1) + sigmoid (BN1 folded into next Linear)
    h = jnp.dot(x_ref[...].astype(mm_dtype), w1_ref[...],
                preferred_element_type=jnp.float32) + b1_ref[...]
    h = _sigmoid_f32(h)

    # Block 1: Linear(h1 -> h2) (absorbs BN1 affine) + sigmoid
    h = jnp.dot(h.astype(w2_ref.dtype), w2_ref[...],
                preferred_element_type=jnp.float32) + b2_ref[...]
    h = _sigmoid_f32(h)

    # Final projection Linear(h2 -> dimension) (absorbs BN2 affine), no activation
    out_ref[...] = jnp.dot(h.astype(w3_ref.dtype), w3_ref[...],
                           preferred_element_type=jnp.float32) + b3_ref[...]


# ----------------------------------------------------------------------------
# One-time (hoisted) parameter preparation: BN fold, lane padding, bf16 cast
# ----------------------------------------------------------------------------
def _fold_bn_into_next_linear(g, be, m, v, w_next, b_next):
    """BN(h) @ W + b = h @ (a*W) + (c @ W + b), a = g*rsqrt(v+eps), c = be - m*a."""
    a = g * jax.lax.rsqrt(v + BN_EPS)          # (1, f)
    c = be - m * a                             # (1, f)
    w_f = a.reshape(-1, 1) * w_next            # (f, out)
    b_f = c @ w_next + b_next                  # (1, out)
    return w_f, b_f


def _pad2(arr, rows, cols):
    r, c = arr.shape
    return jnp.pad(arr, ((0, rows - r), (0, cols - c)))


def prepare_params(params, *, matmul_dtype=jnp.bfloat16):
    """Fold BN into the following Linear, pad hidden dims to 128 lanes, cast
    matmul weights to bf16. Call once; reuse the result for every forward."""
    in_len, h1 = params["w1"].shape
    h2 = params["w2"].shape[1]
    dim = params["w3"].shape[1]
    h1_p = _round_up(h1, LANE)
    h2_p = _round_up(h2, LANE)

    # Eval-mode BN (running stats) folded into the next Linear (f32 math).
    w2f, b2f = _fold_bn_into_next_linear(
        params["g1"], params["be1"], params["m1"], params["v1"],
        params["w2"], params["b2"])
    w3f, b3f = _fold_bn_into_next_linear(
        params["g2"], params["be2"], params["m2"], params["v2"],
        params["w3"], params["b3"])

    # Pad only the hidden (h1, h2) dims. Garbage in padded activation lanes
    # (sigmoid(0)=0.5) is annihilated by the zero rows of the next padded weight.
    w1_p = _pad2(params["w1"], in_len, h1_p).astype(matmul_dtype)
    b1_p = _pad2(params["b1"], 1, h1_p)                       # f32
    w2_p = _pad2(w2f, h1_p, h2_p).astype(matmul_dtype)
    b2_p = _pad2(b2f, 1, h2_p)                                # f32
    w3_p = _pad2(w3f, h2_p, dim).astype(matmul_dtype)         # pad rows only
    b3_p = b3f                                                # f32, (1, dim)

    prep = (w1_p, b1_p, w2_p, b2_p, w3_p, b3_p)
    return tuple(jax.block_until_ready(jax.device_put(a)) for a in prep)


# ----------------------------------------------------------------------------
# Batch-tile selection
# ----------------------------------------------------------------------------
def _pick_tile_b(B):
    """Single grid step for B <= 512 (launch-overhead regime). For larger B,
    biggest divisor of B that is a multiple of 8, in [256, 2048]. Awkward B
    (no such divisor) falls back to one full-batch block."""
    if B <= 512:
        return B
    cap = min(B, 2048)
    for t in range(cap - cap % 8, 255, -8):
        if B % t == 0:
            return t
    return B


# ----------------------------------------------------------------------------
# Forward: single fused pallas_call, no wrapper-side pad/slice ops
# ----------------------------------------------------------------------------
def small_encoder_forward(x, prep, *, tile_b=None):
    """x: (B, input_len) float32. prep: output of prepare_params()."""
    w1_p, b1_p, w2_p, b2_p, w3_p, b3_p = prep
    B, in_len = x.shape
    h1_p = w1_p.shape[1]
    h2_p = w2_p.shape[1]
    dim = w3_p.shape[1]

    if tile_b is None:
        tile_b = _pick_tile_b(B)
    assert B % tile_b == 0, "batch must be divisible by tile_b"
    grid = (B // tile_b,)

    def param_spec(shape):
        # small parameter array fully resident in VMEM for every grid step
        return pl.BlockSpec(shape, lambda i, _s=shape: (0,) * len(_s))

    # Guard scoped-VMEM only when the footprint could exceed v5e's 16 MiB default.
    bytes_in = 2 * tile_b * in_len * x.dtype.itemsize          # double-buffered
    bytes_out = 2 * tile_b * dim * 4
    bytes_w = 2 * sum(int(a.size) * a.dtype.itemsize for a in prep)
    need = bytes_in + bytes_out + bytes_w + (2 << 20)          # + compiler scratch
    vmem_limit = int(need) if need > (16 << 20) else None

    out = pl.pallas_call(
        encoder_kernel,
        out_shape=jax.ShapeDtypeStruct((B, dim), jnp.float32),
        grid=grid,
        in_specs=[
            pl.BlockSpec((tile_b, in_len), lambda i: (i, 0)),   # unpadded x
            param_spec((in_len, h1_p)), param_spec((1, h1_p)),
            param_spec((h1_p, h2_p)), param_spec((1, h2_p)),
            param_spec((h2_p, dim)), param_spec((1, dim)),
        ],
        out_specs=pl.BlockSpec((tile_b, dim), lambda i: (i, 0)),  # unpadded out
        compiler_params=pltpu.CompilerParams(
            dimension_semantics=("parallel",),
            vmem_limit_bytes=vmem_limit),
    )(x, w1_p, b1_p, w2_p, b2_p, w3_p, b3_p)

    return out


# ----------------------------------------------------------------------------
# Synthetic parameters + pure-JAX reference
# ----------------------------------------------------------------------------
def init_params(key, input_len, class_param, dimension):
    """Deterministic synthetic parameters matching the PyTorch module shapes."""
    assert len(class_param) == 2, "this script instantiates a 2-entry class_param"
    h1, h2 = class_param
    keys = jax.random.split(key, 16)

    def lin(kw, kb, fan_in, fan_out):
        # PyTorch nn.Linear default init range; weight stored transposed (in, out)
        bound = 1.0 / jnp.sqrt(fan_in)
        w = jax.random.uniform(kw, (fan_in, fan_out), jnp.float32, -bound, bound)
        b = jax.random.uniform(kb, (1, fan_out), jnp.float32, -bound, bound)
        return w, b

    w1, b1 = lin(keys[0], keys[1], input_len, h1)
    w2, b2 = lin(keys[2], keys[3], h1, h2)
    w3, b3 = lin(keys[4], keys[5], h2, dimension)

    def bn(kg, kb, km, kv, n):
        g = 1.0 + 0.1 * jax.random.normal(kg, (1, n), jnp.float32)
        be = 0.1 * jax.random.normal(kb, (1, n), jnp.float32)
        m = 0.05 * jax.random.normal(km, (1, n), jnp.float32)
        v = 1.0 + 0.1 * jax.random.uniform(kv, (1, n), jnp.float32)
        return g, be, m, v

    g1, be1, m1, v1 = bn(keys[6], keys[7], keys[8], keys[9], h1)
    g2, be2, m2, v2 = bn(keys[10], keys[11], keys[12], keys[13], h2)

    return dict(w1=w1, b1=b1, g1=g1, be1=be1, m1=m1, v1=v1,
                w2=w2, b2=b2, g2=g2, be2=be2, m2=m2, v2=v2,
                w3=w3, b3=b3)


def _bn_ref(x, gamma, beta, mean, var):
    return (x - mean) * jax.lax.rsqrt(var + BN_EPS) * gamma + beta


def reference_forward(x, p):
    """Pure-JAX f32 reference mirroring small_encoder.forward (eval mode)."""
    h = jax.nn.sigmoid(x @ p["w1"] + p["b1"])
    h = _bn_ref(h, p["g1"], p["be1"], p["m1"], p["v1"])
    h = jax.nn.sigmoid(h @ p["w2"] + p["b2"])
    h = _bn_ref(h, p["g2"], p["be2"], p["m2"], p["v2"])
    return h @ p["w3"] + p["b3"]


if __name__ == "__main__":
    # small_encoder(input_len=32, class_param=[64, 48], dimension=16)
    input_len = 32
    class_param = (64, 48)
    dimension = 16
    batch = 16

    key = jax.random.PRNGKey(0)
    kx, kp = jax.random.split(key)
    x = jax.random.normal(kx, (batch, input_len), jnp.float32)
    params = init_params(kp, input_len, class_param, dimension)

    prep = prepare_params(params)                    # hoisted: BN fold + pad + bf16
    out = small_encoder_forward(x, prep)             # tile_b auto: 16 -> grid=(1,)
    out = jax.block_until_ready(out)

    ref = jax.block_until_ready(reference_forward(x, params))
    assert out.shape == (batch, dimension)
    # bf16 matmul operands + approx reciprocal -> relaxed tolerance vs f32 reference
    assert jnp.allclose(out, ref, atol=5e-2, rtol=5e-2), "mismatch vs JAX reference"

    # TODO(synk): training-mode BatchNorm (batch statistics) and Dropout masks are
    # not implemented; this kernel reproduces eval/inference semantics.
    print("KERNEL_OK")
</pallas_src>

<mosaic_0001>
module attributes {stable_mosaic.version = 11 : i64} {
  func.func @encoder_kernel(%arg0: i32, %arg1: memref<16x32xf32, #tpu.memory_space<vmem>>, %arg2: memref<32x128xbf16, #tpu.memory_space<vmem>>, %arg3: memref<1x128xf32, #tpu.memory_space<vmem>>, %arg4: memref<128x128xbf16, #tpu.memory_space<vmem>>, %arg5: memref<1x128xf32, #tpu.memory_space<vmem>>, %arg6: memref<128x16xbf16, #tpu.memory_space<vmem>>, %arg7: memref<1x16xf32, #tpu.memory_space<vmem>>, %arg8: memref<16x16xf32, #tpu.memory_space<vmem>>) attributes {dimension_semantics = [#tpu.dimension_semantics<parallel>], iteration_bounds = array<i64: 1>, scalar_prefetch = 0 : i64, scratch_operands = 0 : i64, tpu.core_type = #tpu.core_type<tc>, window_params = [{transform_indices = @transform_0, window_bounds = array<i64: 16, 32>}, {pipeline_mode = #tpu.pipeline_mode<synchronous>, transform_indices = @transform_1, window_bounds = array<i64: 32, 128>}, {pipeline_mode = #tpu.pipeline_mode<synchronous>, transform_indices = @transform_2, window_bounds = array<i64: 1, 128>}, {pipeline_mode = #tpu.pipeline_mode<synchronous>, transform_indices = @transform_3, window_bounds = array<i64: 128, 128>}, {pipeline_mode = #tpu.pipeline_mode<synchronous>, transform_indices = @transform_4, window_bounds = array<i64: 1, 128>}, {pipeline_mode = #tpu.pipeline_mode<synchronous>, transform_indices = @transform_5, window_bounds = array<i64: 128, 16>}, {pipeline_mode = #tpu.pipeline_mode<synchronous>, transform_indices = @transform_6, window_bounds = array<i64: 1, 16>}, {transform_indices = @transform_7, window_bounds = array<i64: 16, 16>}]} {
    %c0 = arith.constant 0 : index
    %c0_0 = arith.constant 0 : index
    %0 = vector.load %arg1[%c0, %c0_0] : memref<16x32xf32, #tpu.memory_space<vmem>>, vector<16x32xf32>
    %1 = arith.truncf %0 : vector<16x32xf32> to vector<16x32xbf16>
    %c0_1 = arith.constant 0 : index
    %c0_2 = arith.constant 0 : index
    %2 = vector.load %arg2[%c0_1, %c0_2] : memref<32x128xbf16, #tpu.memory_space<vmem>>, vector<32x128xbf16>
    %cst = arith.constant dense<0.000000e+00> : vector<16x128xf32>
    %3 = tpu.matmul %1, %2, %cst {dimension_numbers = #tpu.dot_dimension_numbers<[1], [0], [0], [1], [0, 0, 1, 1], [], []>} : vector<16x32xbf16>, vector<32x128xbf16>, vector<16x128xf32> -> vector<16x128xf32>
    %c0_3 = arith.constant 0 : index
    %c0_4 = arith.constant 0 : index
    %4 = vector.load %arg3[%c0_3, %c0_4] : memref<1x128xf32, #tpu.memory_space<vmem>>, vector<1x128xf32>
    %5 = vector.broadcast %4 : vector<1x128xf32> to vector<16x128xf32>
    %6 = arith.addf %3, %5 : vector<16x128xf32>
    %cst_5 = arith.constant 0.000000e+00 : f32
    %7 = vector.broadcast %cst_5 : f32 to vector<16x128xf32>
    %8 = arith.subf %7, %6 : vector<16x128xf32>
    %9 = math.exp %8 : vector<16x128xf32>
    %cst_6 = arith.constant 1.000000e+00 : f32
    %10 = vector.broadcast %cst_6 : f32 to vector<16x128xf32>
    %11 = arith.addf %10, %9 : vector<16x128xf32>
    %12 = tpu.reciprocal %11 {approx = true} : vector<16x128xf32> -> vector<16x128xf32>
    %13 = arith.truncf %12 : vector<16x128xf32> to vector<16x128xbf16>
    %c0_7 = arith.constant 0 : index
    %c0_8 = arith.constant 0 : index
    %14 = vector.load %arg4[%c0_7, %c0_8] : memref<128x128xbf16, #tpu.memory_space<vmem>>, vector<128x128xbf16>
    %cst_9 = arith.constant dense<0.000000e+00> : vector<16x128xf32>
    %15 = tpu.matmul %13, %14, %cst_9 {dimension_numbers = #tpu.dot_dimension_numbers<[1], [0], [0], [1], [0, 0, 1, 1], [], []>} : vector<16x128xbf16>, vector<128x128xbf16>, vector<16x128xf32> -> vector<16x128xf32>
    %c0_10 = arith.constant 0 : index
    %c0_11 = arith.constant 0 : index
    %16 = vector.load %arg5[%c0_10, %c0_11] : memref<1x128xf32, #tpu.memory_space<vmem>>, vector<1x128xf32>
    %17 = vector.broadcast %16 : vector<1x128xf32> to vector<16x128xf32>
    %18 = arith.addf %15, %17 : vector<16x128xf32>
    %cst_12 = arith.constant 0.000000e+00 : f32
    %19 = vector.broadcast %cst_12 : f32 to vector<16x128xf32>
    %20 = arith.subf %19, %18 : vector<16x128xf32>
    %21 = math.exp %20 : vector<16x128xf32>
    %cst_13 = arith.constant 1.000000e+00 : f32
    %22 = vector.broadcast %cst_13 : f32 to vector<16x128xf32>
    %23 = arith.addf %22, %21 : vector<16x128xf32>
    %24 = tpu.reciprocal %23 {approx = true} : vector<16x128xf32> -> vector<16x128xf32>
    %25 = arith.truncf %24 : vector<16x128xf32> to vector<16x128xbf16>
    %c0_14 = arith.constant 0 : index
    %c0_15 = arith.constant 0 : index
    %26 = vector.load %arg6[%c0_14, %c0_15] : memref<128x16xbf16, #tpu.memory_space<vmem>>, vector<128x16xbf16>
    %cst_16 = arith.constant dense<0.000000e+00> : vector<16x16xf32>
    %27 = tpu.matmul %25, %26, %cst_16 {dimension_numbers = #tpu.dot_dimension_numbers<[1], [0], [0], [1], [0, 0, 1, 1], [], []>} : vector<16x128xbf16>, vector<128x16xbf16>, vector<16x16xf32> -> vector<16x16xf32>
    %c0_17 = arith.constant 0 : index
    %c0_18 = arith.constant 0 : index
    %28 = vector.load %arg7[%c0_17, %c0_18] : memref<1x16xf32, #tpu.memory_space<vmem>>, vector<1x16xf32>
    %29 = vector.broadcast %28 : vector<1x16xf32> to vector<16x16xf32>
    %30 = arith.addf %27, %29 : vector<16x16xf32>
    %c0_19 = arith.constant 0 : index
    %c0_20 = arith.constant 0 : index
    %31 = vector.load %arg8[%c0_19, %c0_20] : memref<16x16xf32, #tpu.memory_space<vmem>>, vector<16x16xf32>
    tpu.vector_store %arg8[%c0_19, %c0_20], %30 {strides = array<i32>} : memref<16x16xf32, #tpu.memory_space<vmem>>, vector<16x16xf32>,
    return
  }
  func.func @transform_0(%arg0: i32) -> (i32, i32) {
    %c0_i32 = arith.constant 0 : i32
    %c0_i32_0 = arith.constant 0 : i32
    return %arg0, %c0_i32 : i32, i32
  }
  func.func @transform_1(%arg0: i32) -> (i32, i32) {
    %c0_i32 = arith.constant 0 : i32
    %c0_i32_0 = arith.constant 0 : i32
    %c0_i32_1 = arith.constant 0 : i32
    return %c0_i32, %c0_i32_0 : i32, i32
  }
  func.func @transform_2(%arg0: i32) -> (i32, i32) {
    %c0_i32 = arith.constant 0 : i32
    %c0_i32_0 = arith.constant 0 : i32
    %c0_i32_1 = arith.constant 0 : i32
    return %c0_i32, %c0_i32_0 : i32, i32
  }
  func.func @transform_3(%arg0: i32) -> (i32, i32) {
    %c0_i32 = arith.constant 0 : i32
    %c0_i32_0 = arith.constant 0 : i32
    %c0_i32_1 = arith.constant 0 : i32
    return %c0_i32, %c0_i32_0 : i32, i32
  }
  func.func @transform_4(%arg0: i32) -> (i32, i32) {
    %c0_i32 = arith.constant 0 : i32
    %c0_i32_0 = arith.constant 0 : i32
    %c0_i32_1 = arith.constant 0 : i32
    return %c0_i32, %c0_i32_0 : i32, i32
  }
  func.func @transform_5(%arg0: i32) -> (i32, i32) {
    %c0_i32 = arith.constant 0 : i32
    %c0_i32_0 = arith.constant 0 : i32
    %c0_i32_1 = arith.constant 0 : i32
    return %c0_i32, %c0_i32_0 : i32, i32
  }
  func.func @transform_6(%arg0: i32) -> (i32, i32) {
    %c0_i32 = arith.constant 0 : i32
    %c0_i32_0 = arith.constant 0 : i32
    %c0_i32_1 = arith.constant 0 : i32
    return %c0_i32, %c0_i32_0 : i32, i32
  }
  func.func @transform_7(%arg0: i32) -> (i32, i32) {
    %c0_i32 = arith.constant 0 : i32
    %c0_i32_0 = arith.constant 0 : i32
    return %arg0, %c0_i32 : i32, i32
  }
}

</mosaic_0001>

<llo_original>
// kernel: tpu_custom_call.1
$region0: #{tpu_custom_call.1}
  #allocation0 [shape = 'u32[]', space=smem, size = 0x4, offset = 0x4, fixed_abs, tag = 'smem constant byte address 0x4 - core index']
  #allocation1 [shape = 'u32[144,128]{1,0:T(1,128)}', space=vmem, size = 0x12000, scoped, tag = 'internal scratch']
  %s0 = inlined_call_operand.vmem [shape: f32[16,32], index: 0, kind: input, shape index: {}]
  %s1 = inlined_call_operand.hbm [shape: bf16[32,128], index: 1, kind: input, shape index: {}]
  %s2 = inlined_call_operand.vmem [shape: f32[1,128], index: 2, kind: input, shape index: {}]
  %s3 = inlined_call_operand.vmem [shape: bf16[128,128], index: 3, kind: input, shape index: {}]
  %s4 = inlined_call_operand.vmem [shape: f32[1,128], index: 4, kind: input, shape index: {}]
  %s5 = inlined_call_operand.vmem [shape: bf16[128,16], index: 5, kind: input, shape index: {}]
  %s6 = inlined_call_operand.vmem [shape: f32[1,16], index: 6, kind: input, shape index: {}]
  %s7 = inlined_call_operand.hbm [shape: f32[16,16], index: 7, kind: output, shape index: {}]
  %s8 = sld [smem:[#allocation0]]
  $region42: #{tpu_custom_call.1} parent=0
    _
  %s10 = ssub.s32 1, %s8
  %s11 = scalar_select 0, %s10, %s8
  $region1: #{tpu_custom_call.1} parent=0
    #allocation2 [shape = 'u8[8192]{0}', space=vmem, size = 0x2000, scoped, tag = 'input window, operand 1, single buffered']
    #allocation3 [shape = 's32[1]{0}', space=sflag, size = 0x4, scoped, tag = 'scoped memory for tpu_custom_call.1']
    #allocation4 [shape = 's32[1]{0}', space=sflag, size = 0x4, scoped, tag = 'scoped memory for tpu_custom_call.1']
    #allocation5 [shape = 'u8[8192]{0}', space=vmem, size = 0x2000, scoped, tag = 'output window, operand 0, single buffered']
    %12 = vsyncpa [#allocation3], 0
    %13 = vsyncpa [#allocation4], 0
    // Predicated region
    $region2: #{tpu_custom_call.1} parent=1 // pred_check
      _
    $region3: #{tpu_custom_call.1} parent=1 // pred_check_branch
      %15 = sbr.rel (0) target = $region5
    $region4: #{tpu_custom_call.1} parent=1 // pred_region
      _
    $region5: #{tpu_custom_call.1} parent=1 // pred_fallthru
      _
    // Predicated region
    $region6: #{tpu_custom_call.1} parent=1 // pred_check
      _
    $region7: #{tpu_custom_call.1} parent=1 // pred_check_branch
      %17 = sbr.rel (0) target = $region9
    $region8: #{tpu_custom_call.1} parent=1 // pred_region
      %s19 = ssub.s32 256, 256
      %20 = vsyncadd [#allocation3], %s19
      %s21 = sshll.u32 [#allocation2], 4
      %s22 = int_to_ptr.vmem [resolvable:$true] %s21
      %27 = dma.hbm_to_vmem [thread:$0]  %s1, 256, %s22, [#allocation3], 64, 64, 4
    $region9: #{tpu_custom_call.1} parent=1 // pred_fallthru
      _
    // Predicated region
    $region10: #{tpu_custom_call.1} parent=1 // pred_check
      _
    $region11: #{tpu_custom_call.1} parent=1 // pred_check_branch
      %29 = sbr.rel (0) target = $region13
    $region12: #{tpu_custom_call.1} parent=1 // pred_region
      _
    $region13: #{tpu_custom_call.1} parent=1 // pred_fallthru
      _
    // Predicated region
    $region14: #{tpu_custom_call.1} parent=1 // pred_check
      _
    $region15: #{tpu_custom_call.1} parent=1 // pred_check_branch
      %31 = sbr.rel (0) target = $region17
    $region16: #{tpu_custom_call.1} parent=1 // pred_region
      _
    $region17: #{tpu_custom_call.1} parent=1 // pred_fallthru
      _
    // Predicated region
    $region18: #{tpu_custom_call.1} parent=1 // pred_check
      _
    $region19: #{tpu_custom_call.1} parent=1 // pred_check_branch
      %33 = sbr.rel (0) target = $region21
    $region20: #{tpu_custom_call.1} parent=1 // pred_region
      _
    $region21: #{tpu_custom_call.1} parent=1 // pred_fallthru
      _
    // Predicated region
    $region22: #{tpu_custom_call.1} parent=1 // pred_check
      _
    $region23: #{tpu_custom_call.1} parent=1 // pred_check_branch
      %35 = sbr.rel (0) target = $region25
    $region24: #{tpu_custom_call.1} parent=1 // pred_region
      _
    $region25: #{tpu_custom_call.1} parent=1 // pred_fallthru
      _
    // Predicated region
    $region26: #{tpu_custom_call.1} parent=1 // pred_check
      _
    $region27: #{tpu_custom_call.1} parent=1 // pred_check_branch
      %37 = sbr.rel (0) target = $region29
    $region28: #{tpu_custom_call.1} parent=1 // pred_region
      _
    $region29: #{tpu_custom_call.1} parent=1 // pred_fallthru
      _
    // Predicated region
    $region30: #{tpu_custom_call.1} parent=1 // pred_check
      _
    $region31: #{tpu_custom_call.1} parent=1 // pred_check_branch
      %39 = sbr.rel (0) target = $region33
    $region32: #{tpu_custom_call.1} parent=1 // pred_region
      %40 = dma.done [#allocation3], 256
    $region33: #{tpu_custom_call.1} parent=1 // pred_fallthru
      _
    %v42 = vld [vmem:[%s0] sm:$0xff]
    %v43 = vld [vmem:[%s0 + $0x8] sm:$0xff]
    %v44 = vpack.c.bf16 %v43, %v42
    %v45 = vld [vmem:[#allocation2] sm:$0xf]
    %v46 = vld [vmem:[#allocation2 + $0x4] sm:$0xf]
    %v47 = vld [vmem:[#allocation2 + $0x8] sm:$0xf]
    %v48 = vld [vmem:[#allocation2 + $0xc] sm:$0xf]
    %v49 = vld [vmem:[%s2] sm:$0x1]
    %v51 = vlaneseq
    %v52 = vshrl.u32 %v51, 7
    %v53 = vsub.s32 0, %v52
    %v54 = vrot.slane %v49, %v53
    %v60 = vunpack.c.l.b16 %v45
    %v61 = vunpack.c.l.b16 %v46
    %v62 = vunpack.c.l.b16 %v47
    %v63 = vunpack.c.l.b16 %v48
    %v64 = vpack.c.b16 %v61, %v60
    %v65 = vpack.c.b16 %v63, %v62
    %vm68 = vcmask 261120
    %v70 = vsel %vm68, %v44, 0
    %72 = vmatprep.subr.bf16.mxu0 0
    %73 = vmatpush1.bf16.msra.mxu0 %v64
    %74 = vmatprep.subr.bf16.mxu0 0
    %75 = vmatpush1.bf16.msra.mxu0 %v65
    %76 = vmatprep.subr.bf16.mxu0 0
    %77 = vmatpush1.bf16.msra.mxu0 0
    %78 = vmatprep.subr.bf16.mxu0 0
    %79 = vmatpush1.bf16.msra.mxu0 0
    %80 = vmatprep.subr.bf16.mxu0 0
    %81 = vmatpush1.bf16.msra.mxu0 0
    %82 = vmatprep.subr.bf16.mxu0 0
    %83 = vmatpush1.bf16.msra.mxu0 0
    %84 = vmatprep.subr.bf16.mxu0 0
    %85 = vmatpush1.bf16.msra.mxu0 0
    %86 = vmatprep.subr.bf16.mxu0 0
    %87 = vmatpush1.bf16.msra.mxu0 0
    %88 = vmatprep.subr.bf16.mxu0 0
    %89 = vmatpush1.bf16.msra.mxu0 0
    %90 = vmatprep.subr.bf16.mxu0 0
    %91 = vmatpush1.bf16.msra.mxu0 0
    %92 = vmatprep.subr.bf16.mxu0 0
    %93 = vmatpush1.bf16.msra.mxu0 0
    %94 = vmatprep.subr.bf16.mxu0 0
    %95 = vmatpush1.bf16.msra.mxu0 0
    %96 = vmatprep.subr.bf16.mxu0 0
    %97 = vmatpush1.bf16.msra.mxu0 0
    %98 = vmatprep.subr.bf16.mxu0 0
    %99 = vmatpush1.bf16.msra.mxu0 0
    %100 = vmatprep.subr.bf16.mxu0 0
    %101 = vmatpush1.bf16.msra.mxu0 0
    %102 = vmatprep.subr.bf16.mxu0 0
    %103 = vmatpush1.bf16.msra.mxu0 0
    %104 = vmatprep.mubr.bf16.mxu0 0
    %105 = vmatmul.mubr.bf16.gmra.mrb[0].mxu0 %v70
    %v106 = vpop.f32.mrb[0].mxu0
    %v107 = vadd.f32 %v54, %v106
    %v108 = vpop.f32.mrb[0].mxu0
    %v109 = vpop.f32.mrb[0].mxu0
    %v110 = vadd.f32 %v54, %v109
    %v111 = vpop.f32.mrb[0].mxu0
    %112 = vdwg.mxu0
    %v113 = vsub.f32 0.0, %v107
    %v114 = vsub.f32 0.0, %v110
    %v115 = vmul.f32 %v113, 1.442695
    %v116 = vpow.pop %v115
    %v117 = vmul.f32 %v114, 1.442695
    %v118 = vpow.pop %v117
    %v119 = vadd.f32 %v116, 1.0
    %v120 = vadd.f32 %v118, 1.0
    %v121 = vrcp.pop %v119
    %v122 = vrcp.pop %v120
    %v123 = vpack.c.bf16 %v122, %v121
    %v124 = vld [vmem:[%s3] sm:$0xf]
    %v125 = vld [vmem:[%s3 + $0x4] sm:$0xf]
    %v126 = vld [vmem:[%s3 + $0x8] sm:$0xf]
    %v127 = vld [vmem:[%s3 + $0xc] sm:$0xf]
    %v128 = vld [vmem:[%s3 + $0x10] sm:$0xf]
    %v129 = vld [vmem:[%s3 + $0x14] sm:$0xf]
    %v130 = vld [vmem:[%s3 + $0x18] sm:$0xf]
    %v131 = vld [vmem:[%s3 + $0x1c] sm:$0xf]
    %v132 = vld [vmem:[%s3 + $0x20] sm:$0xf]
    %v133 = vld [vmem:[%s3 + $0x24] sm:$0xf]
    %v134 = vld [vmem:[%s3 + $0x28] sm:$0xf]
    %v135 = vld [vmem:[%s3 + $0x2c] sm:$0xf]
    %v136 = vld [vmem:[%s3 + $0x30] sm:$0xf]
    %v137 = vld [vmem:[%s3 + $0x34] sm:$0xf]
    %v138 = vld [vmem:[%s3 + $0x38] sm:$0xf]
    %v139 = vld [vmem:[%s3 + $0x3c] sm:$0xf]
    %v140 = vld [vmem:[%s4] sm:$0x1]
    %v142 = vlaneseq
    %v143 = vshrl.u32 %v142, 7
    %v144 = vsub.s32 0, %v143
    %v145 = vrot.slane %v140, %v144
    %v163 = vunpack.c.l.b16 %v124
    %v164 = vunpack.c.l.b16 %v125
    %v165 = vunpack.c.l.b16 %v126
    %v166 = vunpack.c.l.b16 %v127
    %v167 = vunpack.c.l.b16 %v128
    %v168 = vunpack.c.l.b16 %v129
    %v169 = vunpack.c.l.b16 %v130
    %v170 = vunpack.c.l.b16 %v131
    %v171 = vunpack.c.l.b16 %v132
    %v172 = vunpack.c.l.b16 %v133
    %v173 = vunpack.c.l.b16 %v134
    %v174 = vunpack.c.l.b16 %v135
    %v175 = vunpack.c.l.b16 %v136
    %v176 = vunpack.c.l.b16 %v137
    %v177 = vunpack.c.l.b16 %v138
    %v178 = vunpack.c.l.b16 %v139
    %v179 = vpack.c.b16 %v164, %v163
    %v180 = vpack.c.b16 %v166, %v165
    %v181 = vpack.c.b16 %v168, %v167
    %v182 = vpack.c.b16 %v170, %v169
    %v183 = vpack.c.b16 %v172, %v171
    %v184 = vpack.c.b16 %v174, %v173
    %v185 = vpack.c.b16 %v176, %v175
    %v186 = vpack.c.b16 %v178, %v177
    %195 = vmatprep.subr.bf16.mxu0 0
    %196 = vmatpush1.bf16.msra.mxu0 %v179
    %197 = vmatprep.subr.bf16.mxu0 0
    %198 = vmatpush1.bf16.msra.mxu0 %v180
    %199 = vmatprep.subr.bf16.mxu0 0
    %200 = vmatpush1.bf16.msra.mxu0 %v181
    %201 = vmatprep.subr.bf16.mxu0 0
    %202 = vmatpush1.bf16.msra.mxu0 %v182
    %203 = vmatprep.subr.bf16.mxu0 0
    %204 = vmatpush1.bf16.msra.mxu0 %v183
    %205 = vmatprep.subr.bf16.mxu0 0
    %206 = vmatpush1.bf16.msra.mxu0 %v184
    %207 = vmatprep.subr.bf16.mxu0 0
    %208 = vmatpush1.bf16.msra.mxu0 %v185
    %209 = vmatprep.subr.bf16.mxu0 0
    %210 = vmatpush1.bf16.msra.mxu0 %v186
    %211 = vmatprep.subr.bf16.mxu0 0
    %212 = vmatpush1.bf16.msra.mxu0 0
    %213 = vmatprep.subr.bf16.mxu0 0
    %214 = vmatpush1.bf16.msra.mxu0 0
    %215 = vmatprep.subr.bf16.mxu0 0
    %216 = vmatpush1.bf16.msra.mxu0 0
    %217 = vmatprep.subr.bf16.mxu0 0
    %218 = vmatpush1.bf16.msra.mxu0 0
    %219 = vmatprep.subr.bf16.mxu0 0
    %220 = vmatpush1.bf16.msra.mxu0 0
    %221 = vmatprep.subr.bf16.mxu0 0
    %222 = vmatpush1.bf16.msra.mxu0 0
    %223 = vmatprep.subr.bf16.mxu0 0
    %224 = vmatpush1.bf16.msra.mxu0 0
    %225 = vmatprep.subr.bf16.mxu0 0
    %226 = vmatpush1.bf16.msra.mxu0 0
    %227 = vmatprep.mubr.bf16.mxu0 0
    %228 = vmatmul.mubr.bf16.gmra.mrb[0].mxu0 %v123
    %v229 = vpop.f32.mrb[0].mxu0
    %v230 = vadd.f32 %v145, %v229
    %v231 = vpop.f32.mrb[0].mxu0
    %v232 = vpop.f32.mrb[0].mxu0
    %v233 = vadd.f32 %v145, %v232
    %v234 = vpop.f32.mrb[0].mxu0
    %235 = vdwg.mxu0
    %v236 = vsub.f32 0.0, %v230
    %v237 = vsub.f32 0.0, %v233
    %v238 = vmul.f32 %v236, 1.442695
    %v239 = vpow.pop %v238
    %v240 = vmul.f32 %v237, 1.442695
    %v241 = vpow.pop %v240
    %v242 = vadd.f32 %v239, 1.0
    %v243 = vadd.f32 %v241, 1.0
    %v244 = vrcp.pop %v242
    %v245 = vrcp.pop %v243
    %v246 = vpack.c.bf16 %v245, %v244
    %v247 = vld [vmem:[%s5] sm:$0xf]
    %v248 = vld [vmem:[%s5 + $0x4] sm:$0xf]
    %v249 = vld [vmem:[%s5 + $0x8] sm:$0xf]
    %v250 = vld [vmem:[%s5 + $0xc] sm:$0xf]
    %v251 = vld [vmem:[%s5 + $0x10] sm:$0xf]
    %v252 = vld [vmem:[%s5 + $0x14] sm:$0xf]
    %v253 = vld [vmem:[%s5 + $0x18] sm:$0xf]
    %v254 = vld [vmem:[%s5 + $0x1c] sm:$0xf]
    %v255 = vld [vmem:[%s5 + $0x20] sm:$0xf]
    %v256 = vld [vmem:[%s5 + $0x24] sm:$0xf]
    %v257 = vld [vmem:[%s5 + $0x28] sm:$0xf]
    %v258 = vld [vmem:[%s5 + $0x2c] sm:$0xf]
    %v259 = vld [vmem:[%s5 + $0x30] sm:$0xf]
    %v260 = vld [vmem:[%s5 + $0x34] sm:$0xf]
    %v261 = vld [vmem:[%s5 + $0x38] sm:$0xf]
    %v262 = vld [vmem:[%s5 + $0x3c] sm:$0xf]
    %v263 = vld [vmem:[%s6] sm:$0x1]
    %v265 = vlaneseq
    %v266 = vshrl.u32 %v265, 7
    %v267 = vsub.s32 0, %v266
    %v268 = vrot.slane %v263, %v267
    %v286 = vunpack.c.l.b16 %v247
    %v287 = vunpack.c.l.b16 %v248
    %v288 = vunpack.c.l.b16 %v249
    %v289 = vunpack.c.l.b16 %v250
    %v290 = vunpack.c.l.b16 %v251
    %v291 = vunpack.c.l.b16 %v252
    %v292 = vunpack.c.l.b16 %v253
    %v293 = vunpack.c.l.b16 %v254
    %v294 = vunpack.c.l.b16 %v255
    %v295 = vunpack.c.l.b16 %v256
    %v296 = vunpack.c.l.b16 %v257
    %v297 = vunpack.c.l.b16 %v258
    %v298 = vunpack.c.l.b16 %v259
    %v299 = vunpack.c.l.b16 %v260
    %v300 = vunpack.c.l.b16 %v261
    %v301 = vunpack.c.l.b16 %v262
    %v302 = vpack.c.b16 %v287, %v286
    %v303 = vpack.c.b16 %v289, %v288
    %v304 = vpack.c.b16 %v291, %v290
    %v305 = vpack.c.b16 %v293, %v292
    %v306 = vpack.c.b16 %v295, %v294
    %v307 = vpack.c.b16 %v297, %v296
    %v308 = vpack.c.b16 %v299, %v298
    %v309 = vpack.c.b16 %v301, %v300
    %318 = vmatprep.subr.bf16.mxu0 0
    %319 = vmatpush1.bf16.msra.mxu0 %v302
    %320 = vmatprep.subr.bf16.mxu0 0
    %321 = vmatpush1.bf16.msra.mxu0 %v303
    %322 = vmatprep.subr.bf16.mxu0 0
    %323 = vmatpush1.bf16.msra.mxu0 %v304
    %324 = vmatprep.subr.bf16.mxu0 0
    %325 = vmatpush1.bf16.msra.mxu0 %v305
    %326 = vmatprep.subr.bf16.mxu0 0
    %327 = vmatpush1.bf16.msra.mxu0 %v306
    %328 = vmatprep.subr.bf16.mxu0 0
    %329 = vmatpush1.bf16.msra.mxu0 %v307
    %330 = vmatprep.subr.bf16.mxu0 0
    %331 = vmatpush1.bf16.msra.mxu0 %v308
    %332 = vmatprep.subr.bf16.mxu0 0
    %333 = vmatpush1.bf16.msra.mxu0 %v309
    %334 = vmatprep.subr.bf16.mxu0 0
    %335 = vmatpush1.bf16.msra.mxu0 0
    %336 = vmatprep.subr.bf16.mxu0 0
    %337 = vmatpush1.bf16.msra.mxu0 0
    %338 = vmatprep.subr.bf16.mxu0 0
    %339 = vmatpush1.bf16.msra.mxu0 0
    %340 = vmatprep.subr.bf16.mxu0 0
    %341 = vmatpush1.bf16.msra.mxu0 0
    %342 = vmatprep.subr.bf16.mxu0 0
    %343 = vmatpush1.bf16.msra.mxu0 0
    %344 = vmatprep.subr.bf16.mxu0 0
    %345 = vmatpush1.bf16.msra.mxu0 0
    %346 = vmatprep.subr.bf16.mxu0 0
    %347 = vmatpush1.bf16.msra.mxu0 0
    %348 = vmatprep.subr.bf16.mxu0 0
    %349 = vmatpush1.bf16.msra.mxu0 0
    %350 = vmatprep.mubr.bf16.mxu0 0
    %351 = vmatmul.mubr.bf16.gmra.mrb[0].mxu0 %v246
    %v352 = vpop.f32.mrb[0].mxu0
    %v353 = vadd.f32 %v268, %v352
    %v354 = vpop.f32.mrb[0].mxu0
    %v355 = vpop.f32.mrb[0].mxu0
    %v356 = vadd.f32 %v268, %v355
    %v357 = vpop.f32.mrb[0].mxu0
    %358 = vdwg.mxu0
    %vm359 = vcmask 130048
    %360 = vst.msk [vmem:[#allocation5] sm:$0xff] %vm359, %v353
    %361 = vst.msk [vmem:[#allocation5 + $0x8] sm:$0xff] %vm359, %v356
    // Predicated region
    $region34: #{tpu_custom_call.1} parent=1 // pred_check
      _
    $region35: #{tpu_custom_call.1} parent=1 // pred_check_branch
      %363 = sbr.rel (0) target = $region37
    $region36: #{tpu_custom_call.1} parent=1 // pred_region
      %s365 = ssub.s32 256, 256
      %366 = vsyncadd [#allocation4], %s365
      %s367 = sshll.u32 [#allocation5], 4
      %s368 = int_to_ptr.vmem [resolvable:$true] %s367
      %373 = dma.vmem_to_hbm [thread:$0]  %s368, 256, %s7, [#allocation4], 128, 128, 8
    $region37: #{tpu_custom_call.1} parent=1 // pred_fallthru
      _
    // Predicated region
    $region38: #{tpu_custom_call.1} parent=1 // pred_check
      _
    $region39: #{tpu_custom_call.1} parent=1 // pred_check_branch
      %375 = sbr.rel (0) target = $region41
    $region40: #{tpu_custom_call.1} parent=1 // pred_region
      %376 = dma.done [#allocation4], 256
    $region41: #{tpu_custom_call.1} parent=1 // pred_fallthru
      _
    %377 = vsyncpa [#allocation3], 1
    %378 = vsyncpa [#allocation4], 1

</llo_original>
